<compile_context>
chip_gen: v6e
topology: v6e:2x2x1
jax: 0.10.0
libtpu: 0.0.40
codegen_flags: <defaults>
</compile_context>

<pallas_src>
import math
import functools

import jax
import jax.numpy as jnp
from jax.experimental import pallas as pl
from jax.experimental.pallas import tpu as pltpu

# -------- small config consistent with ModelArgs semantics --------
DIM = 256
N_HEAD = 4
N_LOCAL_HEADS = 2                      # GQA: n_head // n_local_heads = 2
HEAD_DIM = DIM // N_HEAD               # 64
KV_SIZE = N_LOCAL_HEADS * HEAD_DIM     # 128
TOTAL_HEAD_DIM = (N_HEAD + 2 * N_LOCAL_HEADS) * HEAD_DIM   # 512
NORM_EPS = 1e-5
ROPE_BASE = 40000.0


def find_multiple(n: int, k: int) -> int:
    return n if n % k == 0 else n + k - (n % k)


INTERMEDIATE = find_multiple(int(2 * (4 * DIM) / 3), 256)   # 768 (same rule as __post_init__)


def _row_tile(n: int, preferred: int = 256) -> int:
    """Largest MXU-friendly row tile that divides n (falls back to full n)."""
    for cand in (preferred, 128, 64, 32, 16, 8):
        if n % cand == 0:
            return cand
    return n


# ---------------- kernel 1: RMSNorm -> wqkv -> RoPE (fused) ----------------
def norm_qkv_rope_kernel(x_ref, nw_ref, wqkv_ref, cos_ref, sin_ref, o_ref, *, eps):
    x = x_ref[...].astype(jnp.float32)
    ms = jnp.mean(x * x, axis=-1, keepdims=True)
    xn = x * jax.lax.rsqrt(ms + eps) * nw_ref[...]
    qkv = jnp.dot(xn, wqkv_ref[...], preferred_element_type=jnp.float32)   # (bm, T)

    # Interleaved-pair RoPE across the q|k sections; cos=1 / sin=0 over v.
    t = qkv.shape[-1]
    lane = jax.lax.broadcasted_iota(jnp.int32, qkv.shape, 1)
    even = (lane % 2) == 0
    prev = pltpu.roll(qkv, 1, axis=1)         # lane i <- lane i-1
    nxt = pltpu.roll(qkv, t - 1, axis=1)      # lane i <- lane i+1
    partner = jnp.where(even, nxt, prev)      # pair partner within each (2j, 2j+1)
    sign = jnp.where(even, -1.0, 1.0)
    out = qkv * cos_ref[...] + sign * partner * sin_ref[...]
    o_ref[...] = out.astype(o_ref.dtype)


def fused_norm_qkv_rope(x2d, norm_w, wqkv_t, cos_t, sin_t):
    n, d = x2d.shape
    t = wqkv_t.shape[1]
    bm = _row_tile(n)
    return pl.pallas_call(
        functools.partial(norm_qkv_rope_kernel, eps=NORM_EPS),
        out_shape=jax.ShapeDtypeStruct((n, t), x2d.dtype),
        grid=(n // bm,),
        in_specs=[pl.BlockSpec((bm, d), lambda i: (i, 0)),
                  pl.BlockSpec((1, d), lambda i: (0, 0)),
                  pl.BlockSpec((d, t), lambda i: (0, 0)),
                  pl.BlockSpec((bm, t), lambda i: (i, 0)),
                  pl.BlockSpec((bm, t), lambda i: (i, 0))],
        out_specs=pl.BlockSpec((bm, t), lambda i: (i, 0)),
        compiler_params=pltpu.CompilerParams(dimension_semantics=("parallel",)),
    )(x2d, norm_w.reshape(1, d), wqkv_t, cos_t, sin_t)


# ---------------- kernel 2: attention (per-batch, all heads, GQA in-kernel) ----------------
def attention_kernel(qkv_ref, mask_ref, o_ref, *, n_head, n_kv, head_dim, scale):
    rep = n_head // n_kv
    qdim = n_head * head_dim
    kvdim = n_kv * head_dim
    qkv = qkv_ref[...]                              # (S, T)
    mask = mask_ref[...].astype(jnp.float32)        # (S, S)
    outs = []
    for h in range(n_head):                         # static, small head count
        g = h // rep                                # GQA: shared kv head, no repeat
        qh = qkv[:, h * head_dim:(h + 1) * head_dim].astype(jnp.float32)
        kg = qkv[:, qdim + g * head_dim: qdim + (g + 1) * head_dim].astype(jnp.float32)
        vg = qkv[:, qdim + kvdim + g * head_dim: qdim + kvdim + (g + 1) * head_dim]
        s = jax.lax.dot_general(qh, kg, (((1,), (1,)), ((), ())),
                                preferred_element_type=jnp.float32) * scale
        s = s + mask
        s = s - jnp.max(s, axis=-1, keepdims=True)
        p = jnp.exp(s)
        p = p * pl.reciprocal(jnp.sum(p, axis=-1, keepdims=True), approx=True)
        outs.append(jnp.dot(p.astype(vg.dtype), vg,
                            preferred_element_type=jnp.float32))
    # lane-dense write: (S, n_head*head_dim) == PyTorch y.transpose(1,2).view(B,S,D)
    o_ref[...] = jnp.concatenate(outs, axis=-1).astype(o_ref.dtype)


def attention(qkv2d, mask2d, batch, seqlen):
    t = qkv2d.shape[1]
    out_dim = N_HEAD * HEAD_DIM
    return pl.pallas_call(
        functools.partial(attention_kernel, n_head=N_HEAD, n_kv=N_LOCAL_HEADS,
                          head_dim=HEAD_DIM, scale=1.0 / math.sqrt(HEAD_DIM)),
        out_shape=jax.ShapeDtypeStruct((batch * seqlen, out_dim), qkv2d.dtype),
        grid=(batch,),
        in_specs=[pl.BlockSpec((seqlen, t), lambda b: (b, 0)),
                  pl.BlockSpec((seqlen, seqlen), lambda b: (0, 0))],
        out_specs=pl.BlockSpec((seqlen, out_dim), lambda b: (b, 0)),
        compiler_params=pltpu.CompilerParams(dimension_semantics=("parallel",)),
    )(qkv2d, mask2d)


# ---------------- kernel 3: wo projection + residual ----------------
def wo_residual_kernel(y_ref, wo_ref, x_ref, o_ref):
    proj = jnp.dot(y_ref[...], wo_ref[...], preferred_element_type=jnp.float32)
    o_ref[...] = (x_ref[...].astype(jnp.float32) + proj).astype(o_ref.dtype)


def wo_residual(y2d, wo_t, x2d):
    n, d = x2d.shape
    m = y2d.shape[1]
    bm = _row_tile(n)
    return pl.pallas_call(
        wo_residual_kernel,
        out_shape=jax.ShapeDtypeStruct((n, d), x2d.dtype),
        grid=(n // bm,),
        in_specs=[pl.BlockSpec((bm, m), lambda i: (i, 0)),
                  pl.BlockSpec((m, d), lambda i: (0, 0)),
                  pl.BlockSpec((bm, d), lambda i: (i, 0))],
        out_specs=pl.BlockSpec((bm, d), lambda i: (i, 0)),
        compiler_params=pltpu.CompilerParams(dimension_semantics=("parallel",)),
    )(y2d, wo_t, x2d)


# ---------------- kernel 4: RMSNorm -> SwiGLU FFN -> residual ----------------
def ffn_residual_kernel(h_ref, nw_ref, w1_ref, w3_ref, w2_ref, o_ref, *, eps):
    h = h_ref[...].astype(jnp.float32)
    ms = jnp.mean(h * h, axis=-1, keepdims=True)
    hn = h * jax.lax.rsqrt(ms + eps) * nw_ref[...]
    a = jnp.dot(hn, w1_ref[...], preferred_element_type=jnp.float32)
    b = jnp.dot(hn, w3_ref[...], preferred_element_type=jnp.float32)
    g = (a * jax.nn.sigmoid(a)) * b                    # silu(w1 x) * (w3 x)
    f = jnp.dot(g, w2_ref[...], preferred_element_type=jnp.float32)
    o_ref[...] = (h + f).astype(o_ref.dtype)


def fused_ffn_residual(h2d, norm_w, w1_t, w3_t, w2_t):
    n, d = h2d.shape
    inter = w1_t.shape[1]
    bm = _row_tile(n)
    return pl.pallas_call(
        functools.partial(ffn_residual_kernel, eps=NORM_EPS),
        out_shape=jax.ShapeDtypeStruct((n, d), h2d.dtype),
        grid=(n // bm,),
        in_specs=[pl.BlockSpec((bm, d), lambda i: (i, 0)),
                  pl.BlockSpec((1, d), lambda i: (0, 0)),
                  pl.BlockSpec((d, inter), lambda i: (0, 0)),
                  pl.BlockSpec((d, inter), lambda i: (0, 0)),
                  pl.BlockSpec((inter, d), lambda i: (0, 0))],
        out_specs=pl.BlockSpec((bm, d), lambda i: (i, 0)),
        compiler_params=pltpu.CompilerParams(dimension_semantics=("parallel",)),
    )(h2d, norm_w.reshape(1, d), w1_t, w3_t, w2_t)


# ---------------- plain-JAX glue: RoPE lane tables ----------------
def _rope_lane_tables(freqs_cis, batch, seqlen):
    # freqs_cis: (S, HEAD_DIM//2, 2) stacked (cos, sin) as in the LLaMA precompute.
    cos = jnp.repeat(freqs_cis[..., 0], 2, axis=-1)    # (S, HEAD_DIM) interleaved pairs
    sin = jnp.repeat(freqs_cis[..., 1], 2, axis=-1)
    cos_full = jnp.concatenate(
        [jnp.tile(cos, (1, N_HEAD)), jnp.tile(cos, (1, N_LOCAL_HEADS)),
         jnp.ones((seqlen, KV_SIZE), cos.dtype)], axis=-1)       # v section: identity
    sin_full = jnp.concatenate(
        [jnp.tile(sin, (1, N_HEAD)), jnp.tile(sin, (1, N_LOCAL_HEADS)),
         jnp.zeros((seqlen, KV_SIZE), sin.dtype)], axis=-1)
    return jnp.tile(cos_full, (batch, 1)), jnp.tile(sin_full, (batch, 1))


def transformer_block(x, input_pos, freqs_cis, mask1, mask2, params):
    del input_pos, mask2   # mask2 unused in dense forward; input_pos only drives the kv-cache
    B, S, D = x.shape
    x2d = x.reshape(B * S, D)
    cos_t, sin_t = _rope_lane_tables(freqs_cis, B, S)

    # --- attention branch (norm + wqkv + RoPE fused; GQA via head indexing) ---
    qkv = fused_norm_qkv_rope(x2d, params["attn_norm_w"], params["wqkv_t"], cos_t, sin_t)
    attn = attention(qkv, mask1[0, 0].astype(jnp.float32), B, S)
    h2d = wo_residual(attn, params["wo_t"], x2d)

    # --- feed-forward branch (norm + SwiGLU + residual fused) ---
    out2d = fused_ffn_residual(h2d, params["ffn_norm_w"],
                               params["w1_t"], params["w3_t"], params["w2_t"])
    return out2d.reshape(B, S, D)


# ---------------- pure-JAX reference (for a sanity check) ----------------
def apply_rotary_emb(x, freqs_cis):
    B, S, H, Dh = x.shape
    xs = x.astype(jnp.float32).reshape(B, S, H, Dh // 2, 2)
    fc = freqs_cis.reshape(1, S, 1, Dh // 2, 2)
    x0, x1 = xs[..., 0], xs[..., 1]
    c, s = fc[..., 0], fc[..., 1]
    out = jnp.stack([x0 * c - x1 * s, x1 * c + x0 * s], axis=-1)
    return out.reshape(B, S, H, Dh).astype(x.dtype)


def reference_block(x, freqs_cis, mask1, params):
    def rms(t, w):
        ms = jnp.mean(t * t, axis=-1, keepdims=True)
        return t * jax.lax.rsqrt(ms + NORM_EPS) * w

    B, S, D = x.shape
    xn = rms(x, params["attn_norm_w"])
    qkv = xn @ params["wqkv_t"]
    q, k, v = jnp.split(qkv, [DIM, DIM + KV_SIZE], axis=-1)
    q = apply_rotary_emb(q.reshape(B, S, N_HEAD, HEAD_DIM), freqs_cis)
    k = apply_rotary_emb(k.reshape(B, S, N_LOCAL_HEADS, HEAD_DIM), freqs_cis)
    v = v.reshape(B, S, N_LOCAL_HEADS, HEAD_DIM)
    q, k, v = (jnp.transpose(t, (0, 2, 1, 3)) for t in (q, k, v))
    rep = N_HEAD // N_LOCAL_HEADS
    k = jnp.repeat(k, rep, axis=1)
    v = jnp.repeat(v, rep, axis=1)
    s = jnp.einsum("bhqd,bhkd->bhqk", q, k) / math.sqrt(HEAD_DIM) + mask1
    p = jax.nn.softmax(s, axis=-1)
    y = jnp.einsum("bhqk,bhkd->bhqd", p, v)
    y = jnp.transpose(y, (0, 2, 1, 3)).reshape(B, S, DIM) @ params["wo_t"]
    h = x + y
    hn = rms(h, params["ffn_norm_w"])
    h1 = hn @ params["w1_t"]
    f = ((h1 * jax.nn.sigmoid(h1)) * (hn @ params["w3_t"])) @ params["w2_t"]
    return h + f


# ---------------- driver ----------------
def init_params(key):
    ks = jax.random.split(key, 5)
    scale = 0.02
    return {
        "wqkv_t": (scale * jax.random.normal(ks[0], (TOTAL_HEAD_DIM, DIM))).T.astype(jnp.float32),
        "wo_t":   (scale * jax.random.normal(ks[1], (DIM, DIM))).T.astype(jnp.float32),
        "w1_t":   (scale * jax.random.normal(ks[2], (INTERMEDIATE, DIM))).T.astype(jnp.float32),
        "w3_t":   (scale * jax.random.normal(ks[3], (INTERMEDIATE, DIM))).T.astype(jnp.float32),
        "w2_t":   (scale * jax.random.normal(ks[4], (DIM, INTERMEDIATE))).T.astype(jnp.float32),
        "attn_norm_w": jnp.ones((DIM,), jnp.float32),
        "ffn_norm_w":  jnp.ones((DIM,), jnp.float32),
    }


if __name__ == "__main__":
    B, S = 2, 8
    key = jax.random.PRNGKey(0)
    kx, kp = jax.random.split(key)
    params = init_params(kp)

    x = jax.random.normal(kx, (B, S, DIM), dtype=jnp.float32)
    input_pos = jnp.arange(S, dtype=jnp.int32)

    # freqs_cis: (S, head_dim // 2, 2) = stacked (cos, sin), as in the LLaMA precompute
    inv_freq = 1.0 / (ROPE_BASE ** (jnp.arange(0, HEAD_DIM, 2, dtype=jnp.float32) / HEAD_DIM))
    ang = jnp.outer(jnp.arange(S, dtype=jnp.float32), inv_freq)
    freqs_cis = jnp.stack([jnp.cos(ang), jnp.sin(ang)], axis=-1)

    # causal additive masks (mask2 is unused by the dense forward path)
    causal = jnp.tril(jnp.ones((S, S), dtype=bool))
    mask1 = jnp.where(causal, 0.0, -1e30).astype(jnp.float32)[None, None]
    mask2 = jnp.zeros_like(mask1)

    out = transformer_block(x, input_pos, freqs_cis, mask1, mask2, params)
    out = jax.block_until_ready(out)

    ref = reference_block(x, freqs_cis, mask1, params)
    assert out.shape == (B, S, DIM) and out.dtype == jnp.float32
    assert jnp.allclose(out, ref, rtol=1e-2, atol=1e-2), float(jnp.max(jnp.abs(out - ref)))

    print("KERNEL_OK")
</pallas_src>

<mosaic_0001>
module attributes {stable_mosaic.version = 11 : i64} {
  func.func @norm_qkv_rope_kernel(%arg0: i32, %arg1: memref<16x256xf32, #tpu.memory_space<vmem>>, %arg2: memref<1x256xf32, #tpu.memory_space<vmem>>, %arg3: memref<256x512xf32, #tpu.memory_space<vmem>>, %arg4: memref<16x512xf32, #tpu.memory_space<vmem>>, %arg5: memref<16x512xf32, #tpu.memory_space<vmem>>, %arg6: memref<16x512xf32, #tpu.memory_space<vmem>>) attributes {dimension_semantics = [#tpu.dimension_semantics<parallel>], iteration_bounds = array<i64: 1>, scalar_prefetch = 0 : i64, scratch_operands = 0 : i64, tpu.core_type = #tpu.core_type<tc>, window_params = [{transform_indices = @transform_0, window_bounds = array<i64: 16, 256>}, {pipeline_mode = #tpu.pipeline_mode<synchronous>, transform_indices = @transform_1, window_bounds = array<i64: 1, 256>}, {pipeline_mode = #tpu.pipeline_mode<synchronous>, transform_indices = @transform_2, window_bounds = array<i64: 256, 512>}, {transform_indices = @transform_3, window_bounds = array<i64: 16, 512>}, {transform_indices = @transform_4, window_bounds = array<i64: 16, 512>}, {transform_indices = @transform_5, window_bounds = array<i64: 16, 512>}]} {
    %c0 = arith.constant 0 : index
    %c0_0 = arith.constant 0 : index
    %0 = vector.load %arg1[%c0, %c0_0] : memref<16x256xf32, #tpu.memory_space<vmem>>, vector<16x256xf32>
    %1 = arith.mulf %0, %0 : vector<16x256xf32>
    %cst = arith.constant dense<0.000000e+00> : vector<16xf32>
    %2 = vector.multi_reduction <add>, %1, %cst [1] : vector<16x256xf32> to vector<16xf32>
    %3 = vector.shape_cast %2 : vector<16xf32> to vector<16x1xf32>
    %cst_1 = arith.constant 2.560000e+02 : f32
    %4 = vector.broadcast %cst_1 : f32 to vector<16x1xf32>
    %5 = arith.divf %3, %4 : vector<16x1xf32>
    %cst_2 = arith.constant 9.99999974E-6 : f32
    %6 = vector.broadcast %cst_2 : f32 to vector<16x1xf32>
    %7 = arith.addf %5, %6 : vector<16x1xf32>
    %8 = math.rsqrt %7 : vector<16x1xf32>
    %9 = vector.broadcast %8 : vector<16x1xf32> to vector<16x256xf32>
    %10 = arith.mulf %0, %9 : vector<16x256xf32>
    %c0_3 = arith.constant 0 : index
    %c0_4 = arith.constant 0 : index
    %11 = vector.load %arg2[%c0_3, %c0_4] : memref<1x256xf32, #tpu.memory_space<vmem>>, vector<1x256xf32>
    %12 = vector.broadcast %11 : vector<1x256xf32> to vector<16x256xf32>
    %13 = arith.mulf %10, %12 : vector<16x256xf32>
    %c0_5 = arith.constant 0 : index
    %c0_6 = arith.constant 0 : index
    %14 = vector.load %arg3[%c0_5, %c0_6] : memref<256x512xf32, #tpu.memory_space<vmem>>, vector<256x512xf32>
    %cst_7 = arith.constant dense<0.000000e+00> : vector<16x512xf32>
    %15 = tpu.matmul %13, %14, %cst_7 {dimension_numbers = #tpu.dot_dimension_numbers<[1], [0], [0], [1], [0, 0, 1, 1], [], []>} : vector<16x256xf32>, vector<256x512xf32>, vector<16x512xf32> -> vector<16x512xf32>
    %16 = tpu.iota {dimensions = array<i32: 1>} : vector<16x512xi32>
    %c2_i32 = arith.constant 2 : i32
    %c0_i32 = arith.constant 0 : i32
    %17 = arith.cmpi eq, %c2_i32, %c0_i32 : i32
    %c1_i32 = arith.constant 1 : i32
    %18 = arith.select %17, %c1_i32, %c2_i32 : i32
    %19 = vector.broadcast %18 : i32 to vector<16x512xi32>
    %20 = arith.remsi %16, %19 : vector<16x512xi32>
    %c0_i32_8 = arith.constant 0 : i32
    %21 = vector.broadcast %c0_i32_8 : i32 to vector<16x512xi32>
    %22 = arith.cmpi ne, %20, %21 : vector<16x512xi32>
    %c0_i32_9 = arith.constant 0 : i32
    %23 = vector.broadcast %c0_i32_9 : i32 to vector<16x512xi32>
    %24 = arith.cmpi slt, %20, %23 : vector<16x512xi32>
    %c0_i32_10 = arith.constant 0 : i32
    %25 = arith.cmpi slt, %18, %c0_i32_10 : i32
    %26 = vector.broadcast %25 : i1 to vector<16x512xi1>
    %27 = vector.broadcast %26 : vector<16x512xi1> to vector<16x512xi1>
    %28 = arith.xori %24, %27 : vector<16x512xi1>
    %29 = arith.andi %28, %22 : vector<16x512xi1>
    %30 = vector.broadcast %18 : i32 to vector<16x512xi32>
    %31 = arith.addi %20, %30 : vector<16x512xi32>
    %32 = arith.select %29, %31, %20 : vector<16x512xi1>, vector<16x512xi32>
    %c0_i32_11 = arith.constant 0 : i32
    %33 = vector.broadcast %c0_i32_11 : i32 to vector<16x512xi32>
    %34 = arith.cmpi eq, %32, %33 : vector<16x512xi32>
    %c1_i32_12 = arith.constant 1 : i32
    %35 = tpu.dynamic_rotate %15 by %c1_i32_12 dim 1 : vector<16x512xf32>, i32 -> vector<16x512xf32>
    %c511_i32 = arith.constant 511 : i32
    %36 = tpu.dynamic_rotate %15 by %c511_i32 dim 1 : vector<16x512xf32>, i32 -> vector<16x512xf32>
    %37 = arith.select %34, %36, %35 : vector<16x512xi1>, vector<16x512xf32>
    %cst_13 = arith.constant -1.000000e+00 : f32
    %cst_14 = arith.constant 1.000000e+00 : f32
    %38 = vector.broadcast %cst_13 : f32 to vector<16x512xf32>
    %39 = vector.broadcast %cst_14 : f32 to vector<16x512xf32>
    %40 = arith.select %34, %38, %39 : vector<16x512xi1>, vector<16x512xf32>
    %c0_15 = arith.constant 0 : index
    %c0_16 = arith.constant 0 : index
    %41 = vector.load %arg4[%c0_15, %c0_16] : memref<16x512xf32, #tpu.memory_space<vmem>>, vector<16x512xf32>
    %42 = arith.mulf %15, %41 : vector<16x512xf32>
    %43 = arith.mulf %40, %37 : vector<16x512xf32>
    %c0_17 = arith.constant 0 : index
    %c0_18 = arith.constant 0 : index
    %44 = vector.load %arg5[%c0_17, %c0_18] : memref<16x512xf32, #tpu.memory_space<vmem>>, vector<16x512xf32>
    %45 = arith.mulf %43, %44 : vector<16x512xf32>
    %46 = arith.addf %42, %45 : vector<16x512xf32>
    %c0_19 = arith.constant 0 : index
    %c0_20 = arith.constant 0 : index
    %47 = vector.load %arg6[%c0_19, %c0_20] : memref<16x512xf32, #tpu.memory_space<vmem>>, vector<16x512xf32>
    tpu.vector_store %arg6[%c0_19, %c0_20], %46 {strides = array<i32>} : memref<16x512xf32, #tpu.memory_space<vmem>>, vector<16x512xf32>,
    return
  }
  func.func @transform_0(%arg0: i32) -> (i32, i32) {
    %c0_i32 = arith.constant 0 : i32
    %c0_i32_0 = arith.constant 0 : i32
    return %arg0, %c0_i32 : i32, i32
  }
  func.func @transform_1(%arg0: i32) -> (i32, i32) {
    %c0_i32 = arith.constant 0 : i32
    %c0_i32_0 = arith.constant 0 : i32
    %c0_i32_1 = arith.constant 0 : i32
    return %c0_i32, %c0_i32_0 : i32, i32
  }
  func.func @transform_2(%arg0: i32) -> (i32, i32) {
    %c0_i32 = arith.constant 0 : i32
    %c0_i32_0 = arith.constant 0 : i32
    %c0_i32_1 = arith.constant 0 : i32
    return %c0_i32, %c0_i32_0 : i32, i32
  }
  func.func @transform_3(%arg0: i32) -> (i32, i32) {
    %c0_i32 = arith.constant 0 : i32
    %c0_i32_0 = arith.constant 0 : i32
    return %arg0, %c0_i32 : i32, i32
  }
  func.func @transform_4(%arg0: i32) -> (i32, i32) {
    %c0_i32 = arith.constant 0 : i32
    %c0_i32_0 = arith.constant 0 : i32
    return %arg0, %c0_i32 : i32, i32
  }
  func.func @transform_5(%arg0: i32) -> (i32, i32) {
    %c0_i32 = arith.constant 0 : i32
    %c0_i32_0 = arith.constant 0 : i32
    return %arg0, %c0_i32 : i32, i32
  }
}

</mosaic_0001>

<llo_original>
// kernel: tpu_custom_call.1
$region0: #{tpu_custom_call.1}
  #allocation0 [shape = 'u32[]', space=smem, size = 0x4, offset = 0x4, fixed_abs, tag = 'smem constant byte address 0x4 - core index']
  #allocation1 [shape = 'u32[144,128]{1,0:T(1,128)}', space=vmem, size = 0x12000, scoped, tag = 'internal scratch']
  %s0 = inlined_call_operand.hbm [shape: f32[16,256], index: 0, kind: input, shape index: {}]
  %s1 = inlined_call_operand.hbm [shape: f32[1,256], index: 1, kind: input, shape index: {}]
  %s2 = inlined_call_operand.hbm [shape: f32[256,512], index: 2, kind: input, shape index: {}]
  %s3 = inlined_call_operand.hbm [shape: f32[16,512], index: 3, kind: input, shape index: {}]
  %s4 = inlined_call_operand.hbm [shape: f32[16,512], index: 4, kind: input, shape index: {}]
  %s5 = inlined_call_operand.hbm [shape: f32[16,512], index: 5, kind: output, shape index: {}]
  %s6 = sld [smem:[#allocation0]]
  $region50: #{tpu_custom_call.1} parent=0
    _
  %s8 = ssub.s32 1, %s6
  %s9 = scalar_select 0, %s8, %s6
  $region1: #{tpu_custom_call.1} parent=0
    #allocation2 [shape = 'u8[16384]{0}', space=vmem, size = 0x4000, scoped, tag = 'input window, operand 0, single buffered']
    #allocation3 [shape = 's32[1]{0}', space=sflag, size = 0x4, scoped, tag = 'scoped memory for tpu_custom_call.1']
    #allocation4 [shape = 's32[1]{0}', space=sflag, size = 0x4, scoped, tag = 'scoped memory for tpu_custom_call.1']
    #allocation5 [shape = 'u8[1024]{0}', space=vmem, size = 0x400, scoped, tag = 'input window, operand 1, single buffered']
    #allocation6 [shape = 's32[1]{0}', space=sflag, size = 0x4, scoped, tag = 'scoped memory for tpu_custom_call.1']
    #allocation7 [shape = 'u8[524288]{0}', space=vmem, size = 0x80000, scoped, tag = 'input window, operand 2, single buffered']
    #allocation8 [shape = 'u8[32768]{0}', space=vmem, size = 0x8000, scoped, tag = 'input window, operand 3, single buffered']
    #allocation9 [shape = 's32[1]{0}', space=sflag, size = 0x4, scoped, tag = 'scoped memory for tpu_custom_call.1']
    #allocation10 [shape = 'u8[32768]{0}', space=vmem, size = 0x8000, scoped, tag = 'input window, operand 4, single buffered']
    #allocation11 [shape = 'u8[32768]{0}', space=vmem, size = 0x8000, scoped, tag = 'output window, operand 0, single buffered']
    %10 = vsyncpa [#allocation3], 0
    %11 = vsyncpa [#allocation6], 0
    %12 = vsyncpa [#allocation9], 0
    %13 = vsyncpa [#allocation4], 0
    // Predicated region
    $region2: #{tpu_custom_call.1} parent=1 // pred_check
      _
    $region3: #{tpu_custom_call.1} parent=1 // pred_check_branch
      %15 = sbr.rel (0) target = $region5
    $region4: #{tpu_custom_call.1} parent=1 // pred_region
      %s17 = ssub.s32 512, 512
      %18 = vsyncadd [#allocation3], %s17
      %s19 = sshll.u32 [#allocation2], 4
      %s20 = int_to_ptr.vmem [resolvable:$true] %s19
      %25 = dma.hbm_to_vmem [thread:$0]  %s0, 512, %s20, [#allocation3], 256, 256, 16
    $region5: #{tpu_custom_call.1} parent=1 // pred_fallthru
      _
    // Predicated region
    $region6: #{tpu_custom_call.1} parent=1 // pred_check
      _
    $region7: #{tpu_custom_call.1} parent=1 // pred_check_branch
      %27 = sbr.rel (0) target = $region9
    $region8: #{tpu_custom_call.1} parent=1 // pred_region
      %s29 = ssub.s32 32, 32
      %30 = vsyncadd [#allocation6], %s29
      %s32 = sshll.u32 [#allocation5], 4
      %s33 = int_to_ptr.vmem [resolvable:$true] %s32
      %35 = dma.hbm_to_vmem [thread:$0]  %s1, 32, %s33, [#allocation6]
    $region9: #{tpu_custom_call.1} parent=1 // pred_fallthru
      _
    // Predicated region
    $region10: #{tpu_custom_call.1} parent=1 // pred_check
      _
    $region11: #{tpu_custom_call.1} parent=1 // pred_check_branch
      %37 = sbr.rel (0) target = $region13
    $region12: #{tpu_custom_call.1} parent=1 // pred_region
      %s39 = ssub.s32 16384, 16384
      %40 = vsyncadd [#allocation6], %s39
      %s41 = sshll.u32 [#allocation7], 4
      %s42 = int_to_ptr.vmem [resolvable:$true] %s41
      %47 = dma.hbm_to_vmem [thread:$0]  %s2, 16384, %s42, [#allocation6], 512, 512, 32
    $region13: #{tpu_custom_call.1} parent=1 // pred_fallthru
      _
    // Predicated region
    $region14: #{tpu_custom_call.1} parent=1 // pred_check
      _
    $region15: #{tpu_custom_call.1} parent=1 // pred_check_branch
      %49 = sbr.rel (0) target = $region17
    $region16: #{tpu_custom_call.1} parent=1 // pred_region
      %s51 = ssub.s32 1024, 1024
      %52 = vsyncadd [#allocation9], %s51
      %s53 = sshll.u32 [#allocation8], 4
      %s54 = int_to_ptr.vmem [resolvable:$true] %s53
      %59 = dma.hbm_to_vmem [thread:$0]  %s3, 1024, %s54, [#allocation9], 512, 512, 32
    $region17: #{tpu_custom_call.1} parent=1 // pred_fallthru
      _
    // Predicated region
    $region18: #{tpu_custom_call.1} parent=1 // pred_check
      _
    $region19: #{tpu_custom_call.1} parent=1 // pred_check_branch
      %61 = sbr.rel (0) target = $region21
    $region20: #{tpu_custom_call.1} parent=1 // pred_region
      %s63 = ssub.s32 1024, 1024
      %64 = vsyncadd [#allocation9], %s63
      %s65 = sshll.u32 [#allocation10], 4
      %s66 = int_to_ptr.vmem [resolvable:$true] %s65
      %71 = dma.hbm_to_vmem [thread:$0]  %s4, 1024, %s66, [#allocation9], 512, 512, 32
    $region21: #{tpu_custom_call.1} parent=1 // pred_fallthru
      _
    // Predicated region
    $region22: #{tpu_custom_call.1} parent=1 // pred_check
      _
    $region23: #{tpu_custom_call.1} parent=1 // pred_check_branch
      %73 = sbr.rel (0) target = $region25
    $region24: #{tpu_custom_call.1} parent=1 // pred_region
      %74 = dma.done [#allocation3], 512
    $region25: #{tpu_custom_call.1} parent=1 // pred_fallthru
      _
    // Predicated region
    $region26: #{tpu_custom_call.1} parent=1 // pred_check
      _
    $region27: #{tpu_custom_call.1} parent=1 // pred_check_branch
      %76 = sbr.rel (0) target = $region29
    $region28: #{tpu_custom_call.1} parent=1 // pred_region
      %77 = dma.done [#allocation6], 32
    $region29: #{tpu_custom_call.1} parent=1 // pred_fallthru
      _
    // Predicated region
    $region30: #{tpu_custom_call.1} parent=1 // pred_check
      _
    $region31: #{tpu_custom_call.1} parent=1 // pred_check_branch
      %79 = sbr.rel (0) target = $region33
    $region32: #{tpu_custom_call.1} parent=1 // pred_region
      %80 = dma.done [#allocation6], 16384
    $region33: #{tpu_custom_call.1} parent=1 // pred_fallthru
      _
    // Predicated region
    $region34: #{tpu_custom_call.1} parent=1 // pred_check
      _
    $region35: #{tpu_custom_call.1} parent=1 // pred_check_branch
      %82 = sbr.rel (0) target = $region37
    $region36: #{tpu_custom_call.1} parent=1 // pred_region
      %83 = dma.done [#allocation9], 1024
    $region37: #{tpu_custom_call.1} parent=1 // pred_fallthru
      _
    // Predicated region
    $region38: #{tpu_custom_call.1} parent=1 // pred_check
      _
    $region39: #{tpu_custom_call.1} parent=1 // pred_check_branch
      %85 = sbr.rel (0) target = $region41
    $region40: #{tpu_custom_call.1} parent=1 // pred_region
      %86 = dma.done [#allocation9], 1024
    $region41: #{tpu_custom_call.1} parent=1 // pred_fallthru
      _
    %v87 = vld [vmem:[#allocation2] sm:$0xff]
    %v88 = vld [vmem:[#allocation2 + $0x8] sm:$0xff]
    %v89 = vld [vmem:[#allocation2 + $0x10] sm:$0xff]
    %v90 = vld [vmem:[#allocation2 + $0x18] sm:$0xff]
    %v91 = vmul.f32 %v87, %v87
    %v92 = vmul.f32 %v88, %v88
    %v93 = vmul.f32 %v89, %v89
    %v94 = vmul.f32 %v90, %v90
    %v95 = vadd.f32 %v91, %v92
    %96 = vadd.xlane.f32.xlu0 %v95
    %v97 = vpop.xlane.xlu0 %96
    %v98 = vadd.f32 %v93, %v94
    %99 = vadd.xlane.f32.xlu0 %v98
    %v100 = vpop.xlane.xlu0 %99
    %v101 = vrcp.pop 256.0
    %v102 = vmul.f32 %v97, %v101
    %v103 = vmul.f32 %v100, %v101
    %v104 = vadd.f32 %v102, 1e-05
    %v105 = vadd.f32 %v103, 1e-05
    %v106 = vrsqrt.pop %v104
    %v107 = vrsqrt.pop %v105
    %v108 = vmul.f32 %v87, %v106
    %v109 = vmul.f32 %v88, %v106
    %v110 = vmul.f32 %v89, %v107
    %v111 = vmul.f32 %v90, %v107
    %v112 = vld [vmem:[#allocation5] sm:$0x3]
    %v114 = vlaneseq
    %v115 = vshrl.u32 %v114, 7
    %v116 = vsub.s32 0, %v115
    %v117 = vrot.slane %v112, %v116
    %v118 = vlaneseq
    %v119 = vshrl.u32 %v118, 7
    %v120 = vsub.s32 1, %v119
    %v121 = vrot.slane %v112, %v120
    %v124 = vmul.f32 %v108, %v117
    %v125 = vmul.f32 %v109, %v121
    %v126 = vmul.f32 %v110, %v117
    %v127 = vmul.f32 %v111, %v121
    %v128 = vld [vmem:[#allocation7] sm:$0xff]
    %v129 = vld [vmem:[#allocation7 + $0x8] sm:$0xff]
    %v130 = vld [vmem:[#allocation7 + $0x10] sm:$0xff]
    %v131 = vld [vmem:[#allocation7 + $0x18] sm:$0xff]
    %v132 = vld [vmem:[#allocation7 + $0x20] sm:$0xff]
    %v133 = vld [vmem:[#allocation7 + $0x28] sm:$0xff]
    %v134 = vld [vmem:[#allocation7 + $0x30] sm:$0xff]
    %v135 = vld [vmem:[#allocation7 + $0x38] sm:$0xff]
    %v136 = vld [vmem:[#allocation7 + $0x40] sm:$0xff]
    %v137 = vld [vmem:[#allocation7 + $0x48] sm:$0xff]
    %v138 = vld [vmem:[#allocation7 + $0x50] sm:$0xff]
    %v139 = vld [vmem:[#allocation7 + $0x58] sm:$0xff]
    %v140 = vld [vmem:[#allocation7 + $0x60] sm:$0xff]
    %v141 = vld [vmem:[#allocation7 + $0x68] sm:$0xff]
    %v142 = vld [vmem:[#allocation7 + $0x70] sm:$0xff]
    %v143 = vld [vmem:[#allocation7 + $0x78] sm:$0xff]
    %v144 = vld [vmem:[#allocation7 + $0x80] sm:$0xff]
    %v145 = vld [vmem:[#allocation7 + $0x88] sm:$0xff]
    %v146 = vld [vmem:[#allocation7 + $0x90] sm:$0xff]
    %v147 = vld [vmem:[#allocation7 + $0x98] sm:$0xff]
    %v148 = vld [vmem:[#allocation7 + $0xa0] sm:$0xff]
    %v149 = vld [vmem:[#allocation7 + $0xa8] sm:$0xff]
    %v150 = vld [vmem:[#allocation7 + $0xb0] sm:$0xff]
    %v151 = vld [vmem:[#allocation7 + $0xb8] sm:$0xff]
    %v152 = vld [vmem:[#allocation7 + $0xc0] sm:$0xff]
    %v153 = vld [vmem:[#allocation7 + $0xc8] sm:$0xff]
    %v154 = vld [vmem:[#allocation7 + $0xd0] sm:$0xff]
    %v155 = vld [vmem:[#allocation7 + $0xd8] sm:$0xff]
    %v156 = vld [vmem:[#allocation7 + $0xe0] sm:$0xff]
    %v157 = vld [vmem:[#allocation7 + $0xe8] sm:$0xff]
    %v158 = vld [vmem:[#allocation7 + $0xf0] sm:$0xff]
    %v159 = vld [vmem:[#allocation7 + $0xf8] sm:$0xff]
    %v160 = vld [vmem:[#allocation7 + $0x100] sm:$0xff]
    %v161 = vld [vmem:[#allocation7 + $0x108] sm:$0xff]
    %v162 = vld [vmem:[#allocation7 + $0x110] sm:$0xff]
    %v163 = vld [vmem:[#allocation7 + $0x118] sm:$0xff]
    %v164 = vld [vmem:[#allocation7 + $0x120] sm:$0xff]
    %v165 = vld [vmem:[#allocation7 + $0x128] sm:$0xff]
    %v166 = vld [vmem:[#allocation7 + $0x130] sm:$0xff]
    %v167 = vld [vmem:[#allocation7 + $0x138] sm:$0xff]
    %v168 = vld [vmem:[#allocation7 + $0x140] sm:$0xff]
    %v169 = vld [vmem:[#allocation7 + $0x148] sm:$0xff]
    %v170 = vld [vmem:[#allocation7 + $0x150] sm:$0xff]
    %v171 = vld [vmem:[#allocation7 + $0x158] sm:$0xff]
    %v172 = vld [vmem:[#allocation7 + $0x160] sm:$0xff]
    %v173 = vld [vmem:[#allocation7 + $0x168] sm:$0xff]
    %v174 = vld [vmem:[#allocation7 + $0x170] sm:$0xff]
    %v175 = vld [vmem:[#allocation7 + $0x178] sm:$0xff]
    %v176 = vld [vmem:[#allocation7 + $0x180] sm:$0xff]
    %v177 = vld [vmem:[#allocation7 + $0x188] sm:$0xff]
    %v178 = vld [vmem:[#allocation7 + $0x190] sm:$0xff]
    %v179 = vld [vmem:[#allocation7 + $0x198] sm:$0xff]
    %v180 = vld [vmem:[#allocation7 + $0x1a0] sm:$0xff]
    %v181 = vld [vmem:[#allocation7 + $0x1a8] sm:$0xff]
    %v182 = vld [vmem:[#allocation7 + $0x1b0] sm:$0xff]
    %v183 = vld [vmem:[#allocation7 + $0x1b8] sm:$0xff]
    %v184 = vld [vmem:[#allocation7 + $0x1c0] sm:$0xff]
    %v185 = vld [vmem:[#allocation7 + $0x1c8] sm:$0xff]
    %v186 = vld [vmem:[#allocation7 + $0x1d0] sm:$0xff]
    %v187 = vld [vmem:[#allocation7 + $0x1d8] sm:$0xff]
    %v188 = vld [vmem:[#allocation7 + $0x1e0] sm:$0xff]
    %v189 = vld [vmem:[#allocation7 + $0x1e8] sm:$0xff]
    %v190 = vld [vmem:[#allocation7 + $0x1f0] sm:$0xff]
    %v191 = vld [vmem:[#allocation7 + $0x1f8] sm:$0xff]
    %v192 = vld [vmem:[#allocation7 + $0x200] sm:$0xff]
    %v193 = vld [vmem:[#allocation7 + $0x208] sm:$0xff]
    %v194 = vld [vmem:[#allocation7 + $0x210] sm:$0xff]
    %v195 = vld [vmem:[#allocation7 + $0x218] sm:$0xff]
    %v196 = vld [vmem:[#allocation7 + $0x220] sm:$0xff]
    %v197 = vld [vmem:[#allocation7 + $0x228] sm:$0xff]
    %v198 = vld [vmem:[#allocation7 + $0x230] sm:$0xff]
    %v199 = vld [vmem:[#allocation7 + $0x238] sm:$0xff]
    %v200 = vld [vmem:[#allocation7 + $0x240] sm:$0xff]
    %v201 = vld [vmem:[#allocation7 + $0x248] sm:$0xff]
    %v202 = vld [vmem:[#allocation7 + $0x250] sm:$0xff]
    %v203 = vld [vmem:[#allocation7 + $0x258] sm:$0xff]
    %v204 = vld [vmem:[#allocation7 + $0x260] sm:$0xff]
    %v205 = vld [vmem:[#allocation7 + $0x268] sm:$0xff]
    %v206 = vld [vmem:[#allocation7 + $0x270] sm:$0xff]
    %v207 = vld [vmem:[#allocation7 + $0x278] sm:$0xff]
    %v208 = vld [vmem:[#allocation7 + $0x280] sm:$0xff]
    %v209 = vld [vmem:[#allocation7 + $0x288] sm:$0xff]
    %v210 = vld [vmem:[#allocation7 + $0x290] sm:$0xff]
    %v211 = vld [vmem:[#allocation7 + $0x298] sm:$0xff]
    %v212 = vld [vmem:[#allocation7 + $0x2a0] sm:$0xff]
    %v213 = vld [vmem:[#allocation7 + $0x2a8] sm:$0xff]
    %v214 = vld [vmem:[#allocation7 + $0x2b0] sm:$0xff]
    %v215 = vld [vmem:[#allocation7 + $0x2b8] sm:$0xff]
    %v216 = vld [vmem:[#allocation7 + $0x2c0] sm:$0xff]
    %v217 = vld [vmem:[#allocation7 + $0x2c8] sm:$0xff]
    %v218 = vld [vmem:[#allocation7 + $0x2d0] sm:$0xff]
    %v219 = vld [vmem:[#allocation7 + $0x2d8] sm:$0xff]
    %v220 = vld [vmem:[#allocation7 + $0x2e0] sm:$0xff]
    %v221 = vld [vmem:[#allocation7 + $0x2e8] sm:$0xff]
    %v222 = vld [vmem:[#allocation7 + $0x2f0] sm:$0xff]
    %v223 = vld [vmem:[#allocation7 + $0x2f8] sm:$0xff]
    %v224 = vld [vmem:[#allocation7 + $0x300] sm:$0xff]
    %v225 = vld [vmem:[#allocation7 + $0x308] sm:$0xff]
    %v226 = vld [vmem:[#allocation7 + $0x310] sm:$0xff]
    %v227 = vld [vmem:[#allocation7 + $0x318] sm:$0xff]
    %v228 = vld [vmem:[#allocation7 + $0x320] sm:$0xff]
    %v229 = vld [vmem:[#allocation7 + $0x328] sm:$0xff]
    %v230 = vld [vmem:[#allocation7 + $0x330] sm:$0xff]
    %v231 = vld [vmem:[#allocation7 + $0x338] sm:$0xff]
    %v232 = vld [vmem:[#allocation7 + $0x340] sm:$0xff]
    %v233 = vld [vmem:[#allocation7 + $0x348] sm:$0xff]
    %v234 = vld [vmem:[#allocation7 + $0x350] sm:$0xff]
    %v235 = vld [vmem:[#allocation7 + $0x358] sm:$0xff]
    %v236 = vld [vmem:[#allocation7 + $0x360] sm:$0xff]
    %v237 = vld [vmem:[#allocation7 + $0x368] sm:$0xff]
    %v238 = vld [vmem:[#allocation7 + $0x370] sm:$0xff]
    %v239 = vld [vmem:[#allocation7 + $0x378] sm:$0xff]
    %v240 = vld [vmem:[#allocation7 + $0x380] sm:$0xff]
    %v241 = vld [vmem:[#allocation7 + $0x388] sm:$0xff]
    %v242 = vld [vmem:[#allocation7 + $0x390] sm:$0xff]
    %v243 = vld [vmem:[#allocation7 + $0x398] sm:$0xff]
    %v244 = vld [vmem:[#allocation7 + $0x3a0] sm:$0xff]
    %v245 = vld [vmem:[#allocation7 + $0x3a8] sm:$0xff]
    %v246 = vld [vmem:[#allocation7 + $0x3b0] sm:$0xff]
    %v247 = vld [vmem:[#allocation7 + $0x3b8] sm:$0xff]
    %v248 = vld [vmem:[#allocation7 + $0x3c0] sm:$0xff]
    %v249 = vld [vmem:[#allocation7 + $0x3c8] sm:$0xff]
    %v250 = vld [vmem:[#allocation7 + $0x3d0] sm:$0xff]
    %v251 = vld [vmem:[#allocation7 + $0x3d8] sm:$0xff]
    %v252 = vld [vmem:[#allocation7 + $0x3e0] sm:$0xff]
    %v253 = vld [vmem:[#allocation7 + $0x3e8] sm:$0xff]
    %v254 = vld [vmem:[#allocation7 + $0x3f0] sm:$0xff]
    %v255 = vld [vmem:[#allocation7 + $0x3f8] sm:$0xff]
    %256 = vmatprep.subr.mxu0 %v189
    %257 = vmatpush1.msra.mxu0 %v188
    %258 = vmatprep.subr.mxu0 %v185
    %259 = vmatpush1.msra.mxu0 %v184
    %260 = vmatprep.subr.mxu0 %v181
    %261 = vmatpush1.msra.mxu0 %v180
    %262 = vmatprep.subr.mxu0 %v177
    %263 = vmatpush1.msra.mxu0 %v176
    %264 = vmatprep.subr.mxu0 %v173
    %265 = vmatpush1.msra.mxu0 %v172
    %266 = vmatprep.subr.mxu0 %v169
    %267 = vmatpush1.msra.mxu0 %v168
    %268 = vmatprep.subr.mxu0 %v165
    %269 = vmatpush1.msra.mxu0 %v164
    %270 = vmatprep.subr.mxu0 %v161
    %271 = vmatpush1.msra.mxu0 %v160
    %272 = vmatprep.subr.mxu0 %v157
    %273 = vmatpush1.msra.mxu0 %v156
    %274 = vmatprep.subr.mxu0 %v153
    %275 = vmatpush1.msra.mxu0 %v152
    %276 = vmatprep.subr.mxu0 %v149
    %277 = vmatpush1.msra.mxu0 %v148
    %278 = vmatprep.subr.mxu0 %v145
    %279 = vmatpush1.msra.mxu0 %v144
    %280 = vmatprep.subr.mxu0 %v141
    %281 = vmatpush1.msra.mxu0 %v140
    %282 = vmatprep.subr.mxu0 %v137
    %283 = vmatpush1.msra.mxu0 %v136
    %284 = vmatprep.subr.mxu0 %v133
    %285 = vmatpush1.msra.mxu0 %v132
    %286 = vmatprep.subr.mxu0 %v129
    %287 = vmatpush1.msra.mxu0 %v128
    %288 = vmatprep.subr.mxu0 %v253
    %289 = vmatpush2.msra.mxu0 %v252
    %290 = vmatprep.subr.mxu0 %v249
    %291 = vmatpush2.msra.mxu0 %v248
    %292 = vmatprep.subr.mxu0 %v245
    %293 = vmatpush2.msra.mxu0 %v244
    %294 = vmatprep.subr.mxu0 %v241
    %295 = vmatpush2.msra.mxu0 %v240
    %296 = vmatprep.subr.mxu0 %v237
    %297 = vmatpush2.msra.mxu0 %v236
    %298 = vmatprep.subr.mxu0 %v233
    %299 = vmatpush2.msra.mxu0 %v232
    %300 = vmatprep.subr.mxu0 %v229
    %301 = vmatpush2.msra.mxu0 %v228
    %302 = vmatprep.subr.mxu0 %v225
    %303 = vmatpush2.msra.mxu0 %v224
    %304 = vmatprep.subr.mxu0 %v221
    %305 = vmatpush2.msra.mxu0 %v220
    %306 = vmatprep.subr.mxu0 %v217
    %307 = vmatpush2.msra.mxu0 %v216
    %308 = vmatprep.subr.mxu0 %v213
    %309 = vmatpush2.msra.mxu0 %v212
    %310 = vmatprep.subr.mxu0 %v209
    %311 = vmatpush2.msra.mxu0 %v208
    %312 = vmatprep.subr.mxu0 %v205
    %313 = vmatpush2.msra.mxu0 %v204
    %314 = vmatprep.subr.mxu0 %v201
    %315 = vmatpush2.msra.mxu0 %v200
    %316 = vmatprep.subr.mxu0 %v197
    %317 = vmatpush2.msra.mxu0 %v196
    %318 = vmatprep.subr.mxu0 %v193
    %319 = vmatpush2.msra.mxu0 %v192
    %320 = vmatprep.mubr.f32.mxu0 %v125
    %321 = vmatmul.mubr.f32.gmra.mxu0 %v124
    %v322 = vpop.f32.mrf.mxu0
    %v323 = vadd.f32 0.0, %v322
    %v324 = vpop.f32.mrf.mxu0
    %v325 = vadd.f32 0.0, %v324
    %326 = vmatprep.mubr.f32.mxu0 %v127
    %327 = vmatmul.mubr.f32.gmra.mxu0 %v126
    %v328 = vpop.f32.mrf.mxu0
    %v329 = vadd.f32 0.0, %v328
    %v330 = vpop.f32.mrf.mxu0
    %v331 = vadd.f32 0.0, %v330
    %332 = vdwg.mxu0
    %333 = vmatprep.subr.mxu0 %v191
    %334 = vmatpush1.msra.mxu0 %v190
    %335 = vmatprep.subr.mxu0 %v187
    %336 = vmatpush1.msra.mxu0 %v186
    %337 = vmatprep.subr.mxu0 %v183
    %338 = vmatpush1.msra.mxu0 %v182
    %339 = vmatprep.subr.mxu0 %v179
    %340 = vmatpush1.msra.mxu0 %v178
    %341 = vmatprep.subr.mxu0 %v175
    %342 = vmatpush1.msra.mxu0 %v174
    %343 = vmatprep.subr.mxu0 %v171
    %344 = vmatpush1.msra.mxu0 %v170
    %345 = vmatprep.subr.mxu0 %v167
    %346 = vmatpush1.msra.mxu0 %v166
    %347 = vmatprep.subr.mxu0 %v163
    %348 = vmatpush1.msra.mxu0 %v162
    %349 = vmatprep.subr.mxu0 %v159
    %350 = vmatpush1.msra.mxu0 %v158
    %351 = vmatprep.subr.mxu0 %v155
    %352 = vmatpush1.msra.mxu0 %v154
    %353 = vmatprep.subr.mxu0 %v151
    %354 = vmatpush1.msra.mxu0 %v150
    %355 = vmatprep.subr.mxu0 %v147
    %356 = vmatpush1.msra.mxu0 %v146
    %357 = vmatprep.subr.mxu0 %v143
    %358 = vmatpush1.msra.mxu0 %v142
    %359 = vmatprep.subr.mxu0 %v139
    %360 = vmatpush1.msra.mxu0 %v138
    %361 = vmatprep.subr.mxu0 %v135
    %362 = vmatpush1.msra.mxu0 %v134
    %363 = vmatprep.subr.mxu0 %v131
    %364 = vmatpush1.msra.mxu0 %v130
    %365 = vmatprep.subr.mxu0 %v255
    %366 = vmatpush2.msra.mxu0 %v254
    %367 = vmatprep.subr.mxu0 %v251
    %368 = vmatpush2.msra.mxu0 %v250
    %369 = vmatprep.subr.mxu0 %v247
    %370 = vmatpush2.msra.mxu0 %v246
    %371 = vmatprep.subr.mxu0 %v243
    %372 = vmatpush2.msra.mxu0 %v242
    %373 = vmatprep.subr.mxu0 %v239
    %374 = vmatpush2.msra.mxu0 %v238
    %375 = vmatprep.subr.mxu0 %v235
    %376 = vmatpush2.msra.mxu0 %v234
    %377 = vmatprep.subr.mxu0 %v231
    %378 = vmatpush2.msra.mxu0 %v230
    %379 = vmatprep.subr.mxu0 %v227
    %380 = vmatpush2.msra.mxu0 %v226
    %381 = vmatprep.subr.mxu0 %v223
    %382 = vmatpush2.msra.mxu0 %v222
    %383 = vmatprep.subr.mxu0 %v219
    %384 = vmatpush2.msra.mxu0 %v218
    %385 = vmatprep.subr.mxu0 %v215
    %386 = vmatpush2.msra.mxu0 %v214
    %387 = vmatprep.subr.mxu0 %v211
    %388 = vmatpush2.msra.mxu0 %v210
    %389 = vmatprep.subr.mxu0 %v207
    %390 = vmatpush2.msra.mxu0 %v206
    %391 = vmatprep.subr.mxu0 %v203
    %392 = vmatpush2.msra.mxu0 %v202
    %393 = vmatprep.subr.mxu0 %v199
    %394 = vmatpush2.msra.mxu0 %v198
    %395 = vmatprep.subr.mxu0 %v195
    %396 = vmatpush2.msra.mxu0 %v194
    %397 = vmatprep.mubr.f32.mxu0 %v125
    %398 = vmatmul.mubr.f32.gmra.mxu0 %v124
    %v399 = vpop.f32.mrf.mxu0
    %v400 = vadd.f32 0.0, %v399
    %v401 = vpop.f32.mrf.mxu0
    %v402 = vadd.f32 0.0, %v401
    %403 = vmatprep.mubr.f32.mxu0 %v127
    %404 = vmatmul.mubr.f32.gmra.mxu0 %v126
    %v405 = vpop.f32.mrf.mxu0
    %v406 = vadd.f32 0.0, %v405
    %v407 = vpop.f32.mrf.mxu0
    %v408 = vadd.f32 0.0, %v407
    %409 = vdwg.mxu0
    %v410 = vlaneseq
    %v411 = vand.u32 %v410, 127
    %v412 = vadd.s32 %v411, 128
    %v413 = vadd.s32 %v411, 256
    %v414 = vadd.s32 %v411, 384
    %vm415 = vcmp.lt.s32.totalorder %v411, 0
    %v416 = vsub.s32 0, %v411
    %v417 = vsel %vm415, %v416, %v411
    %v418 = vshrl.u32 %v417, 1
    %v419 = vand.u32 %v417, 1
    %v420 = vsub.s32 0, %v419
    %v421 = vsel %vm415, %v420, %v419
    %vm422 = vcmp.lt.s32.totalorder %v412, 0
    %v423 = vsub.s32 0, %v412
    %v424 = vsel %vm422, %v423, %v412
    %v425 = vshrl.u32 %v424, 1
    %v426 = vand.u32 %v424, 1
    %v427 = vsub.s32 0, %v426
    %v428 = vsel %vm422, %v427, %v426
    %vm429 = vcmp.lt.s32.totalorder %v413, 0
    %v430 = vsub.s32 0, %v413
    %v431 = vsel %vm429, %v430, %v413
    %v432 = vshrl.u32 %v431, 1
    %v433 = vand.u32 %v431, 1
    %v434 = vsub.s32 0, %v433
    %v435 = vsel %vm429, %v434, %v433
    %vm436 = vcmp.lt.s32.totalorder %v414, 0
    %v437 = vsub.s32 0, %v414
    %v438 = vsel %vm436, %v437, %v414
    %v439 = vshrl.u32 %v438, 1
    %v440 = vand.u32 %v438, 1
    %v441 = vsub.s32 0, %v440
    %v442 = vsel %vm436, %v441, %v440
    %vm443 = vcmp.ne.s32.totalorder %v421, 0
    %vm444 = vcmp.ne.s32.totalorder %v428, 0
    %vm445 = vcmp.ne.s32.totalorder %v435, 0
    %vm446 = vcmp.ne.s32.totalorder %v442, 0
    %vm447 = vcmp.lt.s32.totalorder %v421, 0
    %vm448 = vcmp.lt.s32.totalorder %v428, 0
    %vm449 = vcmp.lt.s32.totalorder %v435, 0
    %vm450 = vcmp.lt.s32.totalorder %v442, 0
    %vm451 = vmand %vm447, %vm443
    %vm452 = vmand %vm448, %vm444
    %vm453 = vmand %vm449, %vm445
    %vm454 = vmand %vm450, %vm446
    %v455 = vadd.s32 %v421, 2
    %v456 = vadd.s32 %v428, 2
    %v457 = vadd.s32 %v435, 2
    %v458 = vadd.s32 %v442, 2
    %v459 = vsel %vm451, %v455, %v421
    %v460 = vsel %vm452, %v456, %v428
    %v461 = vsel %vm453, %v457, %v435
    %v462 = vsel %vm454, %v458, %v442
    %vm463 = vcmp.eq.s32.totalorder %v459, 0
    %vm464 = vcmp.eq.s32.totalorder %v460, 0
    %vm465 = vcmp.eq.s32.totalorder %v461, 0
    %vm466 = vcmp.eq.s32.totalorder %v462, 0
    %467 = vrot.lane.b32.xlu0 %v323, 1
    %v468 = vpop.permute.xlu0 %467
    %469 = vrot.lane.b32.xlu0 %v329, 1
    %v470 = vpop.permute.xlu0 %469
    %471 = vrot.lane.b32.xlu0 %v325, 1
    %v472 = vpop.permute.xlu0 %471
    %473 = vrot.lane.b32.xlu0 %v331, 1
    %v474 = vpop.permute.xlu0 %473
    %475 = vrot.lane.b32.xlu0 %v400, 1
    %v476 = vpop.permute.xlu0 %475
    %477 = vrot.lane.b32.xlu0 %v406, 1
    %v478 = vpop.permute.xlu0 %477
    %479 = vrot.lane.b32.xlu0 %v402, 1
    %v480 = vpop.permute.xlu0 %479
    %481 = vrot.lane.b32.xlu0 %v408, 1
    %v482 = vpop.permute.xlu0 %481
    %vm483 = vcmp.lt.s32.totalorder %v411, 1
    %v484 = vsel %vm483, %v476, %v480
    %v485 = vsel %vm483, %v478, %v482
    %v486 = vsel %vm483, %v472, %v476
    %v487 = vsel %vm483, %v474, %v478
    %v488 = vsel %vm483, %v468, %v472
    %v489 = vsel %vm483, %v470, %v474
    %v490 = vsel %vm483, %v480, %v468
    %v491 = vsel %vm483, %v482, %v470
    %492 = vrot.lane.b32.xlu0 %v323, 127
    %v493 = vpop.permute.xlu0 %492
    %494 = vrot.lane.b32.xlu0 %v329, 127
    %v495 = vpop.permute.xlu0 %494
    %496 = vrot.lane.b32.xlu0 %v325, 127
    %v497 = vpop.permute.xlu0 %496
    %498 = vrot.lane.b32.xlu0 %v331, 127
    %v499 = vpop.permute.xlu0 %498
    %500 = vrot.lane.b32.xlu0 %v400, 127
    %v501 = vpop.permute.xlu0 %500
    %502 = vrot.lane.b32.xlu0 %v406, 127
    %v503 = vpop.permute.xlu0 %502
    %504 = vrot.lane.b32.xlu0 %v402, 127
    %v505 = vpop.permute.xlu0 %504
    %506 = vrot.lane.b32.xlu0 %v408, 127
    %v507 = vpop.permute.xlu0 %506
    %vm508 = vcmp.lt.s32.totalorder %v411, 127
    %v509 = vsel %vm508, %v501, %v505
    %v510 = vsel %vm508, %v503, %v507
    %v511 = vsel %vm508, %v497, %v501
    %v512 = vsel %vm508, %v499, %v503
    %v513 = vsel %vm508, %v493, %v497
    %v514 = vsel %vm508, %v495, %v499
    %v515 = vsel %vm508, %v505, %v493
    %v516 = vsel %vm508, %v507, %v495
    %v517 = vsel %vm463, %v513, %v490
    %v518 = vsel %vm464, %v511, %v488
    %v519 = vsel %vm465, %v509, %v486
    %v520 = vsel %vm466, %v515, %v484
    %v521 = vsel %vm463, %v514, %v491
    %v522 = vsel %vm464, %v512, %v489
    %v523 = vsel %vm465, %v510, %v487
    %v524 = vsel %vm466, %v516, %v485
    %v525 = vsel %vm463, -1.0, 1.0
    %v526 = vsel %vm464, -1.0, 1.0
    %v527 = vsel %vm465, -1.0, 1.0
    %v528 = vsel %vm466, -1.0, 1.0
    %v529 = vld [vmem:[#allocation8] sm:$0xff]
    %v530 = vld [vmem:[#allocation8 + $0x8] sm:$0xff]
    %v531 = vld [vmem:[#allocation8 + $0x10] sm:$0xff]
    %v532 = vld [vmem:[#allocation8 + $0x18] sm:$0xff]
    %v533 = vld [vmem:[#allocation8 + $0x20] sm:$0xff]
    %v534 = vld [vmem:[#allocation8 + $0x28] sm:$0xff]
    %v535 = vld [vmem:[#allocation8 + $0x30] sm:$0xff]
    %v536 = vld [vmem:[#allocation8 + $0x38] sm:$0xff]
    %v537 = vmul.f32 %v323, %v529
    %v538 = vmul.f32 %v325, %v530
    %v539 = vmul.f32 %v400, %v531
    %v540 = vmul.f32 %v402, %v532
    %v541 = vmul.f32 %v329, %v533
    %v542 = vmul.f32 %v331, %v534
    %v543 = vmul.f32 %v406, %v535
    %v544 = vmul.f32 %v408, %v536
    %v545 = vmul.f32 %v525, %v517
    %v546 = vmul.f32 %v526, %v518
    %v547 = vmul.f32 %v527, %v519
    %v548 = vmul.f32 %v528, %v520
    %v549 = vmul.f32 %v525, %v521
    %v550 = vmul.f32 %v526, %v522
    %v551 = vmul.f32 %v527, %v523
    %v552 = vmul.f32 %v528, %v524
    %v553 = vld [vmem:[#allocation10] sm:$0xff]
    %v554 = vld [vmem:[#allocation10 + $0x8] sm:$0xff]
    %v555 = vld [vmem:[#allocation10 + $0x10] sm:$0xff]
    %v556 = vld [vmem:[#allocation10 + $0x18] sm:$0xff]
    %v557 = vld [vmem:[#allocation10 + $0x20] sm:$0xff]
    %v558 = vld [vmem:[#allocation10 + $0x28] sm:$0xff]
    %v559 = vld [vmem:[#allocation10 + $0x30] sm:$0xff]
    %v560 = vld [vmem:[#allocation10 + $0x38] sm:$0xff]
    %v561 = vmul.f32 %v545, %v553
    %v562 = vmul.f32 %v546, %v554
    %v563 = vmul.f32 %v547, %v555
    %v564 = vmul.f32 %v548, %v556
    %v565 = vmul.f32 %v549, %v557
    %v566 = vmul.f32 %v550, %v558
    %v567 = vmul.f32 %v551, %v559
    %v568 = vmul.f32 %v552, %v560
    %v569 = vadd.f32 %v537, %v561
    %v570 = vadd.f32 %v538, %v562
    %v571 = vadd.f32 %v539, %v563
    %v572 = vadd.f32 %v540, %v564
    %v573 = vadd.f32 %v541, %v565
    %v574 = vadd.f32 %v542, %v566
    %v575 = vadd.f32 %v543, %v567
    %v576 = vadd.f32 %v544, %v568
    %577 = vst [vmem:[#allocation11] sm:$0xff] %v569
    %578 = vst [vmem:[#allocation11 + $0x8] sm:$0xff] %v570
    %579 = vst [vmem:[#allocation11 + $0x10] sm:$0xff] %v571
    %580 = vst [vmem:[#allocation11 + $0x18] sm:$0xff] %v572
    %581 = vst [vmem:[#allocation11 + $0x20] sm:$0xff] %v573
    %582 = vst [vmem:[#allocation11 + $0x28] sm:$0xff] %v574
    %583 = vst [vmem:[#allocation11 + $0x30] sm:$0xff] %v575
    %584 = vst [vmem:[#allocation11 + $0x38] sm:$0xff] %v576
    // Predicated region
    $region42: #{tpu_custom_call.1} parent=1 // pred_check
      _
    $region43: #{tpu_custom_call.1} parent=1 // pred_check_branch
      %586 = sbr.rel (0) target = $region45
    $region44: #{tpu_custom_call.1} parent=1 // pred_region
      %s588 = ssub.s32 1024, 1024
      %589 = vsyncadd [#allocation4], %s588
      %s590 = sshll.u32 [#allocation11], 4
      %s591 = int_to_ptr.vmem [resolvable:$true] %s590
      %596 = dma.vmem_to_hbm [thread:$0]  %s591, 1024, %s5, [#allocation4], 512, 512, 32
    $region45: #{tpu_custom_call.1} parent=1 // pred_fallthru
      _
    // Predicated region
    $region46: #{tpu_custom_call.1} parent=1 // pred_check
      _
    $region47: #{tpu_custom_call.1} parent=1 // pred_check_branch
      %598 = sbr.rel (0) target = $region49
    $region48: #{tpu_custom_call.1} parent=1 // pred_region
      %599 = dma.done [#allocation4], 1024
    $region49: #{tpu_custom_call.1} parent=1 // pred_fallthru
      _
    %600 = vsyncpa [#allocation3], 1
    %601 = vsyncpa [#allocation6], 1
    %602 = vsyncpa [#allocation9], 1
    %603 = vsyncpa [#allocation4], 1

</llo_original>
